<compile_context>
chip_gen: v7x
topology: tpu7x:2x2x1
jax: 0.10.0
libtpu: 0.0.40
codegen_flags: <defaults>
</compile_context>

<pallas_src>
import jax
import jax.numpy as jnp
import numpy as np
from jax.experimental import pallas as pl
from jax.experimental.pallas import tpu as pltpu

INPUT_SIZE = 4096      # 64 * 64 face image, flattened
HIDDEN = 128
H2 = 2 * HIDDEN        # 256: fused fwd|bwd width
NUM_CLASSES = 40
OUT_PAD = 128          # lane-dense output width (slice back to 40 in the wrapper)
BATCH_PAD = 16         # bf16 sublane tile is (16, 128)
TK = 512               # layer-0 reduction tile
K_TILES = INPUT_SIZE // TK
SEQ_LEN = 1            # the fused-W_hh form below is only valid for seq_len == 1


def birnn_kernel(x_ref, w0_ref, b_ref, w1fc_ref, out_ref, acc_ref):
    # NOTE: valid only because seq_len == 1 and h0 == 0 (W_hh terms vanish,
    # b_hh is folded into the bias).  Do not reuse for seq_len > 1.
    k = pl.program_id(0)

    @pl.when(k == 0)
    def _():
        acc_ref[...] = jnp.zeros_like(acc_ref)

    # Layer 0 partial matmul: (Bp, TK) x (TK, 256), bf16 inputs, f32 accumulate.
    acc_ref[...] += jnp.dot(x_ref[...].astype(jnp.bfloat16), w0_ref[...],
                            preferred_element_type=jnp.float32)

    @pl.when(k == pl.num_programs(0) - 1)
    def _():
        # Layer 0 nonlinearity (f32 bias-add + tanh).
        h0 = jnp.tanh(acc_ref[...] + b_ref[0:1, :])                      # (Bp, 256) f32

        # Layer 1, both directions fused into one (256, 256) matmul.
        w1 = w1fc_ref[:, 0:H2]                                            # (256, 256) bf16
        h1 = jnp.tanh(jnp.dot(h0.astype(jnp.bfloat16), w1,
                              preferred_element_type=jnp.float32)
                      + b_ref[1:2, :])                                    # (Bp, 256) f32

        # Final fc, output padded to 128 lanes -> unmasked vector stores.
        wfc = w1fc_ref[:, H2:H2 + OUT_PAD]                                # (256, 128) bf16
        out_ref[...] = (jnp.dot(h1.astype(jnp.bfloat16), wfc,
                                preferred_element_type=jnp.float32)
                        + b_ref[2:3, 0:OUT_PAD])


def init_params(key):
    """Raw f32 per-direction params, mimicking PyTorch's U(-1/sqrt(hidden), ...)."""
    kb = 1.0 / np.sqrt(HIDDEN)
    kfc = 1.0 / np.sqrt(2 * HIDDEN)
    keys = jax.random.split(key, 14)

    def u(k, shape, bound):
        return jax.random.uniform(k, shape, jnp.float32, -bound, bound)

    # layer 0 (forward / reverse); weights stored pre-transposed as (in, out)
    w0f = u(keys[0], (INPUT_SIZE, HIDDEN), kb)
    b0f = u(keys[1], (1, HIDDEN), kb) + u(keys[2], (1, HIDDEN), kb)     # b_ih + b_hh
    w0b = u(keys[3], (INPUT_SIZE, HIDDEN), kb)
    b0b = u(keys[4], (1, HIDDEN), kb) + u(keys[5], (1, HIDDEN), kb)
    # layer 1 (input = 256)
    w1f = u(keys[6], (H2, HIDDEN), kb)
    b1f = u(keys[7], (1, HIDDEN), kb) + u(keys[8], (1, HIDDEN), kb)
    w1b = u(keys[9], (H2, HIDDEN), kb)
    b1b = u(keys[10], (1, HIDDEN), kb) + u(keys[11], (1, HIDDEN), kb)
    # fc
    wfc = u(keys[12], (H2, NUM_CLASSES), kfc)
    bfc = u(keys[13], (1, NUM_CLASSES), kfc)
    return (w0f, b0f, w0b, b0b, w1f, b1f, w1b, b1b, wfc, bfc)


def pack_params(params):
    """Fuse directions, cast weights to bf16, pad fc to 128 lanes, pack biases.

    Returns:
      w0   : (4096, 256) bf16   [layer-0 fwd|bwd]
      b    : (3, 256)    f32    rows: layer-0 bias, layer-1 bias, fc bias (padded)
      w1fc : (256, 384)  bf16   cols 0:256 = layer-1 fwd|bwd, cols 256:384 = padded fc
    """
    (w0f, b0f, w0b, b0b, w1f, b1f, w1b, b1b, wfc, bfc) = params
    w0 = jnp.concatenate([w0f, w0b], axis=1).astype(jnp.bfloat16)        # (4096, 256)
    w1 = jnp.concatenate([w1f, w1b], axis=1).astype(jnp.bfloat16)        # (256, 256)
    wfc_p = jnp.zeros((H2, OUT_PAD), jnp.float32)
    wfc_p = wfc_p.at[:, :NUM_CLASSES].set(wfc).astype(jnp.bfloat16)      # (256, 128)
    w1fc = jnp.concatenate([w1, wfc_p], axis=1)                          # (256, 384)

    b = jnp.zeros((3, H2), jnp.float32)
    b = b.at[0, :].set(jnp.concatenate([b0f, b0b], axis=1)[0])
    b = b.at[1, :].set(jnp.concatenate([b1f, b1b], axis=1)[0])
    b = b.at[2, :NUM_CLASSES].set(bfc[0])
    return (w0, b, w1fc)


def birnn_forward(x_img, packed):
    w0, b, w1fc = packed
    B = x_img.shape[0]
    x = x_img.reshape(B, SEQ_LEN, -1)                                    # mirror module reshape
    assert x.shape[1] == 1, "fused W_hh-free kernel requires seq_len == 1"
    x = x.reshape(B, -1).astype(jnp.float32)                             # (B, 4096)
    assert x.shape[1] == INPUT_SIZE

    # Pad batch up to a multiple of 16 so packed bf16 tiles / MXU rows are full.
    Bp = ((B + BATCH_PAD - 1) // BATCH_PAD) * BATCH_PAD
    if Bp != B:
        x = jnp.pad(x, ((0, Bp - B), (0, 0)))

    flops = 2 * Bp * (INPUT_SIZE * H2 + H2 * H2 + H2 * OUT_PAD)
    bytes_accessed = (x.size * 4 + w0.size * 2 + w1fc.size * 2
                      + b.size * 4 + Bp * OUT_PAD * 4)

    out = pl.pallas_call(
        birnn_kernel,
        out_shape=jax.ShapeDtypeStruct((Bp, OUT_PAD), jnp.float32),
        grid=(K_TILES,),
        in_specs=[
            pl.BlockSpec((Bp, TK), lambda k: (0, k)),                    # x K-tile
            pl.BlockSpec((TK, H2), lambda k: (k, 0)),                    # w0 K-tile
            pl.BlockSpec((3, H2), lambda k: (0, 0)),                     # packed biases (resident)
            pl.BlockSpec((H2, H2 + OUT_PAD), lambda k: (0, 0)),          # w1|fc (resident)
        ],
        out_specs=pl.BlockSpec((Bp, OUT_PAD), lambda k: (0, 0)),         # resident accumul. output
        scratch_shapes=[pltpu.VMEM((Bp, H2), jnp.float32)],              # layer-0 accumulator
        compiler_params=pltpu.CompilerParams(
            dimension_semantics=("arbitrary",),                          # reduction axis
        ),
        cost_estimate=pl.CostEstimate(
            flops=flops,
            transcendentals=Bp * 2 * H2,
            bytes_accessed=bytes_accessed,
        ),
    )(x, w0, b, w1fc)
    return out[:B, :NUM_CLASSES]


def ref_forward_f32(x_img, params):
    """Plain-JAX f32 reference of the original module's math."""
    (w0f, b0f, w0b, b0b, w1f, b1f, w1b, b1b, wfc, bfc) = params
    x = x_img.reshape(x_img.shape[0], -1).astype(jnp.float32)
    h0f = jnp.tanh(x @ w0f + b0f)
    h0b = jnp.tanh(x @ w0b + b0b)
    out0 = jnp.concatenate([h0f, h0b], axis=-1)
    h1f = jnp.tanh(out0 @ w1f + b1f)
    h1b = jnp.tanh(out0 @ w1b + b1b)
    out1 = jnp.concatenate([h1f, h1b], axis=-1)
    return out1 @ wfc + bfc


def ref_forward_quantized(x_img, packed):
    """Reference mirroring the kernel's bf16 quantization points (tight tolerance)."""
    w0, b, w1fc = packed
    B = x_img.shape[0]
    x = x_img.reshape(B, -1).astype(jnp.float32)

    def q(a):  # bf16 quantize, compute in f32
        return a.astype(jnp.bfloat16).astype(jnp.float32)

    w0f32 = w0.astype(jnp.float32)
    w1f32 = w1fc[:, :H2].astype(jnp.float32)
    wfcf32 = w1fc[:, H2:].astype(jnp.float32)
    h0 = jnp.tanh(q(x) @ w0f32 + b[0:1, :])
    h1 = jnp.tanh(q(h0) @ w1f32 + b[1:2, :])
    out = q(h1) @ wfcf32 + b[2:3, :OUT_PAD]
    return out[:, :NUM_CLASSES]


if __name__ == "__main__":
    key = jax.random.PRNGKey(0)
    k_x, k_p = jax.random.split(key)

    # NCHW face image: (batch=2, channels=1, 64, 64) -> flattens to 4096 features
    x = jax.random.normal(k_x, (2, 1, 64, 64), dtype=jnp.float32)
    params = init_params(k_p)
    packed = pack_params(params)

    out = birnn_forward(x, packed)
    out = jax.block_until_ready(out)
    assert out.shape == (2, NUM_CLASSES)

    # Tight check against a reference with identical bf16 quantization points.
    ref_q = ref_forward_quantized(x, packed)
    np.testing.assert_allclose(np.asarray(out), np.asarray(ref_q), rtol=2e-3, atol=2e-3)

    # Loose check against the pure-f32 module semantics (bf16 weight quantization noise).
    ref_f32 = ref_forward_f32(x, params)
    np.testing.assert_allclose(np.asarray(out), np.asarray(ref_f32), rtol=5e-2, atol=5e-2)

    print("KERNEL_OK")
</pallas_src>

<mosaic_0001>
module attributes {stable_mosaic.version = 11 : i64} {
  func.func @birnn_kernel(%arg0: i32, %arg1: memref<16x512xf32, #tpu.memory_space<vmem>>, %arg2: memref<512x256xbf16, #tpu.memory_space<vmem>>, %arg3: memref<3x256xf32, #tpu.memory_space<vmem>>, %arg4: memref<256x384xbf16, #tpu.memory_space<vmem>>, %arg5: memref<16x128xf32, #tpu.memory_space<vmem>>, %arg6: memref<16x256xf32, #tpu.memory_space<vmem>>) attributes {dimension_semantics = [#tpu.dimension_semantics<arbitrary>], iteration_bounds = array<i64: 8>, scalar_prefetch = 0 : i64, scratch_operands = 1 : i64, tpu.core_type = #tpu.core_type<tc>, window_params = [{transform_indices = @transform_0, window_bounds = array<i64: 16, 512>}, {transform_indices = @transform_1, window_bounds = array<i64: 512, 256>}, {pipeline_mode = #tpu.pipeline_mode<synchronous>, transform_indices = @transform_2, window_bounds = array<i64: 3, 256>}, {pipeline_mode = #tpu.pipeline_mode<synchronous>, transform_indices = @transform_3, window_bounds = array<i64: 256, 384>}, {pipeline_mode = #tpu.pipeline_mode<synchronous>, transform_indices = @transform_4, window_bounds = array<i64: 16, 128>}]} {
    %c0_i32 = arith.constant 0 : i32
    %0 = arith.cmpi eq, %arg0, %c0_i32 : i32
    %1 = arith.extui %0 : i1 to i32
    %c0_i32_0 = arith.constant 0 : i32
    %2 = arith.cmpi ne, %1, %c0_i32_0 : i32
    scf.if %2 {
      %cst_9 = arith.constant 0.000000e+00 : f32
      %13 = vector.broadcast %cst_9 : f32 to vector<16x256xf32>
      %c0_10 = arith.constant 0 : index
      %c0_11 = arith.constant 0 : index
      %14 = vector.load %arg6[%c0_10, %c0_11] : memref<16x256xf32, #tpu.memory_space<vmem>>, vector<16x256xf32>
      tpu.vector_store %arg6[%c0_10, %c0_11], %13 {strides = array<i32>} : memref<16x256xf32, #tpu.memory_space<vmem>>, vector<16x256xf32>,
    } else {
    }
    %c0 = arith.constant 0 : index
    %c0_1 = arith.constant 0 : index
    %3 = vector.load %arg6[%c0, %c0_1] : memref<16x256xf32, #tpu.memory_space<vmem>>, vector<16x256xf32>
    %c0_2 = arith.constant 0 : index
    %c0_3 = arith.constant 0 : index
    %4 = vector.load %arg1[%c0_2, %c0_3] : memref<16x512xf32, #tpu.memory_space<vmem>>, vector<16x512xf32>
    %5 = arith.truncf %4 : vector<16x512xf32> to vector<16x512xbf16>
    %c0_4 = arith.constant 0 : index
    %c0_5 = arith.constant 0 : index
    %6 = vector.load %arg2[%c0_4, %c0_5] : memref<512x256xbf16, #tpu.memory_space<vmem>>, vector<512x256xbf16>
    %cst = arith.constant dense<0.000000e+00> : vector<16x256xf32>
    %7 = tpu.matmul %5, %6, %cst {dimension_numbers = #tpu.dot_dimension_numbers<[1], [0], [0], [1], [0, 0, 1, 1], [], []>} : vector<16x512xbf16>, vector<512x256xbf16>, vector<16x256xf32> -> vector<16x256xf32>
    %8 = arith.addf %3, %7 : vector<16x256xf32>
    %c0_6 = arith.constant 0 : index
    %c0_7 = arith.constant 0 : index
    %9 = vector.load %arg6[%c0_6, %c0_7] : memref<16x256xf32, #tpu.memory_space<vmem>>, vector<16x256xf32>
    tpu.vector_store %arg6[%c0_6, %c0_7], %8 {strides = array<i32>} : memref<16x256xf32, #tpu.memory_space<vmem>>, vector<16x256xf32>,
    %c7_i32 = arith.constant 7 : i32
    %10 = arith.cmpi eq, %arg0, %c7_i32 : i32
    %11 = arith.extui %10 : i1 to i32
    %c0_i32_8 = arith.constant 0 : i32
    %12 = arith.cmpi ne, %11, %c0_i32_8 : i32
    scf.if %12 {
      %c0_9 = arith.constant 0 : index
      %c0_10 = arith.constant 0 : index
      %13 = vector.load %arg6[%c0_9, %c0_10] : memref<16x256xf32, #tpu.memory_space<vmem>>, vector<16x256xf32>
      %c0_11 = arith.constant 0 : index
      %c0_12 = arith.constant 0 : index
      %14 = vector.load %arg3[%c0_11, %c0_12] : memref<3x256xf32, #tpu.memory_space<vmem>>, vector<1x256xf32>
      %15 = vector.broadcast %14 : vector<1x256xf32> to vector<16x256xf32>
      %16 = arith.addf %13, %15 : vector<16x256xf32>
      %17 = math.tanh %16 : vector<16x256xf32>
      %c0_13 = arith.constant 0 : index
      %c0_14 = arith.constant 0 : index
      %18 = vector.load %arg4[%c0_13, %c0_14] : memref<256x384xbf16, #tpu.memory_space<vmem>>, vector<256x256xbf16>
      %19 = arith.truncf %17 : vector<16x256xf32> to vector<16x256xbf16>
      %cst_15 = arith.constant dense<0.000000e+00> : vector<16x256xf32>
      %20 = tpu.matmul %19, %18, %cst_15 {dimension_numbers = #tpu.dot_dimension_numbers<[1], [0], [0], [1], [0, 0, 1, 1], [], []>} : vector<16x256xbf16>, vector<256x256xbf16>, vector<16x256xf32> -> vector<16x256xf32>
      %c1 = arith.constant 1 : index
      %c0_16 = arith.constant 0 : index
      %21 = vector.load %arg3[%c1, %c0_16] : memref<3x256xf32, #tpu.memory_space<vmem>>, vector<1x256xf32>
      %22 = vector.broadcast %21 : vector<1x256xf32> to vector<16x256xf32>
      %23 = arith.addf %20, %22 : vector<16x256xf32>
      %24 = math.tanh %23 : vector<16x256xf32>
      %c0_17 = arith.constant 0 : index
      %c256 = arith.constant 256 : index
      %25 = vector.load %arg4[%c0_17, %c256] : memref<256x384xbf16, #tpu.memory_space<vmem>>, vector<256x128xbf16>
      %26 = arith.truncf %24 : vector<16x256xf32> to vector<16x256xbf16>
      %cst_18 = arith.constant dense<0.000000e+00> : vector<16x128xf32>
      %27 = tpu.matmul %26, %25, %cst_18 {dimension_numbers = #tpu.dot_dimension_numbers<[1], [0], [0], [1], [0, 0, 1, 1], [], []>} : vector<16x256xbf16>, vector<256x128xbf16>, vector<16x128xf32> -> vector<16x128xf32>
      %c2 = arith.constant 2 : index
      %c0_19 = arith.constant 0 : index
      %28 = vector.load %arg3[%c2, %c0_19] : memref<3x256xf32, #tpu.memory_space<vmem>>, vector<1x128xf32>
      %29 = vector.broadcast %28 : vector<1x128xf32> to vector<16x128xf32>
      %30 = arith.addf %27, %29 : vector<16x128xf32>
      %c0_20 = arith.constant 0 : index
      %c0_21 = arith.constant 0 : index
      %31 = vector.load %arg5[%c0_20, %c0_21] : memref<16x128xf32, #tpu.memory_space<vmem>>, vector<16x128xf32>
      tpu.vector_store %arg5[%c0_20, %c0_21], %30 {strides = array<i32>} : memref<16x128xf32, #tpu.memory_space<vmem>>, vector<16x128xf32>,
    } else {
    }
    return
  }
  func.func @transform_0(%arg0: i32) -> (i32, i32) {
    %c0_i32 = arith.constant 0 : i32
    %c0_i32_0 = arith.constant 0 : i32
    return %c0_i32, %arg0 : i32, i32
  }
  func.func @transform_1(%arg0: i32) -> (i32, i32) {
    %c0_i32 = arith.constant 0 : i32
    %c0_i32_0 = arith.constant 0 : i32
    return %arg0, %c0_i32 : i32, i32
  }
  func.func @transform_2(%arg0: i32) -> (i32, i32) {
    %c0_i32 = arith.constant 0 : i32
    %c0_i32_0 = arith.constant 0 : i32
    %c0_i32_1 = arith.constant 0 : i32
    return %c0_i32, %c0_i32_0 : i32, i32
  }
  func.func @transform_3(%arg0: i32) -> (i32, i32) {
    %c0_i32 = arith.constant 0 : i32
    %c0_i32_0 = arith.constant 0 : i32
    %c0_i32_1 = arith.constant 0 : i32
    return %c0_i32, %c0_i32_0 : i32, i32
  }
  func.func @transform_4(%arg0: i32) -> (i32, i32) {
    %c0_i32 = arith.constant 0 : i32
    %c0_i32_0 = arith.constant 0 : i32
    %c0_i32_1 = arith.constant 0 : i32
    return %c0_i32, %c0_i32_0 : i32, i32
  }
}

</mosaic_0001>

<llo_original>
// kernel: tpu_custom_call.1
$region0: #{tpu_custom_call.1}
  #allocation0 [shape = 'u32[]', space=smem, size = 0x4, offset = 0x4, fixed_abs, tag = 'smem constant byte address 0x4 - core index']
  #allocation1 [shape = 'u32[144,128]{1,0:T(1,128)}', space=vmem, size = 0x12000, scoped, tag = 'internal scratch']
  #allocation2 [shape = 'f32[16,256]{1,0:T(8,128)}', space=vmem, size = 0x4000, scoped, tag = 'scratch operand']
  %s0 = inlined_call_operand.hbm [shape: f32[16,4096], index: 0, kind: input, shape index: {}]
  %s1 = inlined_call_operand.hbm [shape: bf16[4096,256], index: 1, kind: input, shape index: {}]
  %s2 = inlined_call_operand.hbm [shape: f32[3,256], index: 2, kind: input, shape index: {}]
  %s3 = inlined_call_operand.hbm [shape: bf16[256,384], index: 3, kind: input, shape index: {}]
  %s4 = inlined_call_operand.hbm [shape: f32[16,128], index: 4, kind: output, shape index: {}]
  %s5 = sld [smem:[#allocation0]]
  $region73: #{tpu_custom_call.1} parent=0
    _
  %s7 = ssub.s32 1, %s5
  %s8 = scalar_select 0, %s7, %s5
  $region1: #{tpu_custom_call.1} parent=0
    #allocation3 [shape = 'u8[65536]{0}', space=vmem, size = 0x10000, scoped, tag = 'input window, operand 0']
    #allocation4 [shape = 's32[2]{0}', space=sflag, size = 0x8, scoped, tag = 'scoped memory for tpu_custom_call.1']
    #allocation5 [shape = 's32[2]{0}', space=sflag, size = 0x8, scoped, tag = 'scoped memory for tpu_custom_call.1']
    #allocation6 [shape = 'u8[524288]{0}', space=vmem, size = 0x80000, scoped, tag = 'input window, operand 1']
    #allocation7 [shape = 's32[2]{0}', space=sflag, size = 0x8, scoped, tag = 'scoped memory for tpu_custom_call.1']
    #allocation8 [shape = 'u8[4096]{0}', space=vmem, size = 0x1000, scoped, tag = 'input window, operand 2, single buffered']
    #allocation9 [shape = 'u8[196608]{0}', space=vmem, size = 0x30000, scoped, tag = 'input window, operand 3, single buffered']
    #allocation10 [shape = 's32[1]{0}', space=sflag, size = 0x4, scoped, tag = 'scoped memory for tpu_custom_call.1']
    #allocation11 [shape = 'u8[8192]{0}', space=vmem, size = 0x2000, scoped, tag = 'output window, operand 0, single buffered']
    %9 = vsyncpa [#allocation4], 0
    %s10 = scalar_lea.sflag [#allocation4], 1
    %11 = vsyncpa %s10, 0
    %12 = vsyncpa [#allocation7], 0
    %s13 = scalar_lea.sflag [#allocation7], 1
    %14 = vsyncpa %s13, 0
    %15 = vsyncpa [#allocation10], 0
    %16 = vsyncpa [#allocation5], 0
    loop: start=0, step=1, limit=10
    $region2: #{tpu_custom_call.1} parent=1 // loop_pre_header
      _
    $region3: #{tpu_custom_call.1} parent=1 // loop_header
      %s18 = sphi 0, %s22
      %p19 = scmp.ge.s32.totalorder %s18, 10
      %s28 = sphi 0, %s30
      %s31 = sphi 0, %s28
      %s32 = sphi 0, %s31
      %s48 = sphi 0, %s32
      %s54 = sphi 0, %s56
      %s57 = sphi 0, %s54
      %s58 = sphi 0, %s57
      %s74 = sphi 0, %s58
      %s78 = sphi 0, %s78
      %s80 = sphi 0, %s78
      %s81 = sphi 0, %s80
      %s95 = sphi 0, %s81
      %s99 = sphi 0, %s99
      %s101 = sphi 0, %s99
      %s102 = sphi 0, %s101
      %s116 = sphi 0, %s102
      %s120 = sphi 0, %s120
      %s122 = sphi 0, %s120
      %s123 = sphi 0, %s122
      %s137 = sphi 0, %s123
    $region4: #{tpu_custom_call.1} parent=1 // loop_header_branch
      %21 = sbr.rel (%p19) target = $region8
    $region5: #{tpu_custom_call.1} parent=1 // loop_body
      %s23 = ssub.s32 %s18, 1
      %s24 = ssub.s32 %s18, 2
      %s25 = sadd.s32 %s18, 1
      %s26 = ssub.s32 %s18, %s25
      %p27 = scmp.eq.s32.totalorder %s26, 0
      %s29 = sadd.s32 %s28, 1
      %s30 = scalar_select %p27, %s28, %s29
      %p33 = pneg %p27
      %p34 = scmp.eq.s32.totalorder %s18, 7
      %p35 = por %p33, %p34
      %p36 = scmp.ne.s32.totalorder %s28, %s31
      %p37 = scmp.eq.s32.totalorder %s18, 0
      %p38 = por %p36, %p37
      %p39 = scmp.ne.s32.totalorder %s28, %s31
      %p40 = scmp.eq.s32.totalorder %s23, 7
      %p41 = por %p39, %p40
      %p42 = scmp.ne.s32.totalorder %s31, %s32
      %p43 = scmp.eq.s32.totalorder %s23, 0
      %p44 = por %p42, %p43
      %p45 = scmp.ne.s32.totalorder %s31, %s32
      %p46 = scmp.eq.s32.totalorder %s24, 7
      %p47 = por %p45, %p46
      %p49 = scmp.ne.s32.totalorder %s32, %s48
      %p50 = scmp.eq.s32.totalorder %s24, 0
      %p51 = por %p49, %p50
      %s52 = ssub.s32 %s18, %s25
      %p53 = scmp.eq.s32.totalorder %s52, 0
      %s55 = sadd.s32 %s54, 1
      %s56 = scalar_select %p53, %s54, %s55
      %p59 = pneg %p53
      %p60 = scmp.eq.s32.totalorder %s18, 7
      %p61 = por %p59, %p60
      %p62 = scmp.ne.s32.totalorder %s54, %s57
      %p63 = scmp.eq.s32.totalorder %s18, 0
      %p64 = por %p62, %p63
      %p65 = scmp.ne.s32.totalorder %s54, %s57
      %p66 = scmp.eq.s32.totalorder %s23, 7
      %p67 = por %p65, %p66
      %p68 = scmp.ne.s32.totalorder %s57, %s58
      %p69 = scmp.eq.s32.totalorder %s23, 0
      %p70 = por %p68, %p69
      %p71 = scmp.ne.s32.totalorder %s57, %s58
      %p72 = scmp.eq.s32.totalorder %s24, 7
      %p73 = por %p71, %p72
      %p75 = scmp.ne.s32.totalorder %s58, %s74
      %p76 = scmp.eq.s32.totalorder %s24, 0
      %p77 = por %p75, %p76
      %s79 = sadd.s32 %s78, 1
      %p82 = scmp.eq.s32.totalorder %s18, 7
      %p83 = scmp.ne.s32.totalorder %s78, %s80
      %p84 = scmp.eq.s32.totalorder %s18, 0
      %p85 = por %p83, %p84
      %p86 = scmp.ne.s32.totalorder %s78, %s80
      %p87 = scmp.eq.s32.totalorder %s23, 7
      %p88 = por %p86, %p87
      %p89 = scmp.ne.s32.totalorder %s80, %s81
      %p90 = scmp.eq.s32.totalorder %s23, 0
      %p91 = por %p89, %p90
      %p92 = scmp.ne.s32.totalorder %s80, %s81
      %p93 = scmp.eq.s32.totalorder %s24, 7
      %p94 = por %p92, %p93
      %p96 = scmp.ne.s32.totalorder %s81, %s95
      %p97 = scmp.eq.s32.totalorder %s24, 0
      %p98 = por %p96, %p97
      %s100 = sadd.s32 %s99, 1
      %p103 = scmp.eq.s32.totalorder %s18, 7
      %p104 = scmp.ne.s32.totalorder %s99, %s101
      %p105 = scmp.eq.s32.totalorder %s18, 0
      %p106 = por %p104, %p105
      %p107 = scmp.ne.s32.totalorder %s99, %s101
      %p108 = scmp.eq.s32.totalorder %s23, 7
      %p109 = por %p107, %p108
      %p110 = scmp.ne.s32.totalorder %s101, %s102
      %p111 = scmp.eq.s32.totalorder %s23, 0
      %p112 = por %p110, %p111
      %p113 = scmp.ne.s32.totalorder %s101, %s102
      %p114 = scmp.eq.s32.totalorder %s24, 7
      %p115 = por %p113, %p114
      %p117 = scmp.ne.s32.totalorder %s102, %s116
      %p118 = scmp.eq.s32.totalorder %s24, 0
      %p119 = por %p117, %p118
      %s121 = sadd.s32 %s120, 1
      %p124 = scmp.eq.s32.totalorder %s18, 7
      %p125 = scmp.ne.s32.totalorder %s120, %s122
      %p126 = scmp.eq.s32.totalorder %s18, 0
      %p127 = por %p125, %p126
      %p128 = scmp.ne.s32.totalorder %s120, %s122
      %p129 = scmp.eq.s32.totalorder %s23, 7
      %p130 = por %p128, %p129
      %p131 = scmp.ne.s32.totalorder %s122, %s123
      %p132 = scmp.eq.s32.totalorder %s23, 0
      %p133 = por %p131, %p132
      %p134 = scmp.ne.s32.totalorder %s122, %s123
      %p135 = scmp.eq.s32.totalorder %s24, 7
      %p136 = por %p134, %p135
      %p138 = scmp.ne.s32.totalorder %s123, %s137
      %p139 = scmp.eq.s32.totalorder %s24, 0
      %p140 = por %p138, %p139
      %p141 = scmp.le.s32.totalorder 1, %s18
      %p142 = scmp.lt.s32.totalorder %s18, 9
      %p143 = pnand %p141, %p142
      %p144 = pneg %p143
      // Predicated region
      $region9: #{tpu_custom_call.1} parent=5 // pred_check
        _
      $region10: #{tpu_custom_call.1} parent=5 // pred_check_branch
        %146 = sbr.rel (%p143) target = $region12
      $region11: #{tpu_custom_call.1} parent=5 // pred_region
        %s147 = ssub.s32 %s18, 1
        // Predicated region
        $region13: #{tpu_custom_call.1} parent=11 // pred_check
          %p148 = pneg %p91
        $region14: #{tpu_custom_call.1} parent=11 // pred_check_branch
          %150 = sbr.rel (%p148) target = $region16
        $region15: #{tpu_custom_call.1} parent=11 // pred_region
          %s152 = ssub.s32 128, 128
          %153 = vsyncadd [#allocation7], %s152
          %s155 = sshll.u32 [#allocation8], 4
          %s156 = int_to_ptr.vmem [resolvable:$true] %s155
          %158 = dma.hbm_to_vmem [thread:$0]  %s2, 128, %s156, [#allocation7]
        $region16: #{tpu_custom_call.1} parent=11 // pred_fallthru
          _
        // Predicated region
        $region17: #{tpu_custom_call.1} parent=11 // pred_check
          %p159 = pneg %p112
        $region18: #{tpu_custom_call.1} parent=11 // pred_check_branch
          %161 = sbr.rel (%p159) target = $region20
        $region19: #{tpu_custom_call.1} parent=11 // pred_region
          %s163 = ssub.s32 6144, 6144
          %164 = vsyncadd [#allocation10], %s163
          %s165 = sshll.u32 [#allocation9], 4
          %s166 = int_to_ptr.vmem [resolvable:$true] %s165
          %171 = dma.hbm_to_vmem [thread:$0]  %s3, 6144, %s166, [#allocation10], 192, 192, 12
        $region20: #{tpu_custom_call.1} parent=11 // pred_fallthru
          _
      $region12: #{tpu_custom_call.1} parent=5 // pred_fallthru
        _
      %p172 = scmp.lt.s32.totalorder %s18, 8
      // Predicated region
      $region21: #{tpu_custom_call.1} parent=5 // pred_check
        %p173 = pneg %p172
      $region22: #{tpu_custom_call.1} parent=5 // pred_check_branch
        %175 = sbr.rel (%p173) target = $region24
      $region23: #{tpu_custom_call.1} parent=5 // pred_region
        // Predicated region
        $region25: #{tpu_custom_call.1} parent=23 // pred_check
          %p176 = pneg %p38
        $region26: #{tpu_custom_call.1} parent=23 // pred_check_branch
          %178 = sbr.rel (%p176) target = $region28
        $region27: #{tpu_custom_call.1} parent=23 // pred_region
          %s179 = sand.u32 %s28, 1
          %s180 = scalar_lea.sflag [#allocation4], %s179
          %s181 = sand.u32 %s28, 1
          %s182 = smul.addr %s181, 64
          %s183 = scalar_lea.vmem [#allocation3], %s182
          %s184 = smul.u32 4, %s18
          %s186 = ssub.s32 1024, 1024
          %187 = vsyncadd %s180, %s186
          %s188 = smul.addr %s184, 128
          %s189 = scalar_lea.hbm %s0, %s188
          %s190 = sshll.u32 %s183, 4
          %s191 = int_to_ptr.vmem [resolvable:$true] %s190
          %196 = dma.hbm_to_vmem [thread:$0]  %s189, 1024, %s191, %s180, 4096, 512, 32
        $region28: #{tpu_custom_call.1} parent=23 // pred_fallthru
          _
        // Predicated region
        $region29: #{tpu_custom_call.1} parent=23 // pred_check
          %p197 = pneg %p64
        $region30: #{tpu_custom_call.1} parent=23 // pred_check_branch
          %199 = sbr.rel (%p197) target = $region32
        $region31: #{tpu_custom_call.1} parent=23 // pred_region
          %s200 = sand.u32 %s18, 1
          %s201 = scalar_lea.sflag [#allocation7], %s200
          %s202 = sand.u32 %s54, 1
          %s203 = smul.addr %s202, 512
          %s204 = scalar_lea.vmem [#allocation6], %s203
          %s205 = smul.u32 64, %s18
          %s207 = ssub.s32 8192, 8192
          %208 = vsyncadd %s201, %s207
          %s209 = smul.addr %s205, 2
          %s210 = smul.addr %s209, 64
          %s211 = scalar_lea.hbm %s1, %s210
          %s212 = sshll.u32 %s204, 4
          %s213 = int_to_ptr.vmem [resolvable:$true] %s212
          %218 = dma.hbm_to_vmem [thread:$0]  %s211, 8192, %s213, %s201, 128, 128, 8
        $region32: #{tpu_custom_call.1} parent=23 // pred_fallthru
          _
      $region24: #{tpu_custom_call.1} parent=5 // pred_fallthru
        _
      %p219 = scmp.le.s32.totalorder 1, %s18
      %p220 = scmp.lt.s32.totalorder %s18, 9
      %p221 = pnand %p219, %p220
      %p222 = pneg %p221
      // Predicated region
      $region33: #{tpu_custom_call.1} parent=5 // pred_check
        _
      $region34: #{tpu_custom_call.1} parent=5 // pred_check_branch
        %224 = sbr.rel (%p221) target = $region36
      $region35: #{tpu_custom_call.1} parent=5 // pred_region
        %s225 = ssub.s32 %s18, 1
        %s226 = sand.u32 %s31, 1
        %s227 = scalar_lea.sflag [#allocation4], %s226
        %s228 = sand.u32 %s31, 1
        %s229 = smul.addr %s228, 64
        %s230 = scalar_lea.vmem [#allocation3], %s229
        // Predicated region
        $region37: #{tpu_custom_call.1} parent=35 // pred_check
          %p231 = pneg %p44
        $region38: #{tpu_custom_call.1} parent=35 // pred_check_branch
          %233 = sbr.rel (%p231) target = $region40
        $region39: #{tpu_custom_call.1} parent=35 // pred_region
          %234 = dma.done %s227, 1024
        $region40: #{tpu_custom_call.1} parent=35 // pred_fallthru
          _
        %s235 = sand.u32 %s23, 1
        %s236 = scalar_lea.sflag [#allocation7], %s235
        %s237 = sand.u32 %s57, 1
        %s238 = smul.addr %s237, 512
        %s239 = scalar_lea.vmem [#allocation6], %s238
        // Predicated region
        $region41: #{tpu_custom_call.1} parent=35 // pred_check
          %p240 = pneg %p70
        $region42: #{tpu_custom_call.1} parent=35 // pred_check_branch
          %242 = sbr.rel (%p240) target = $region44
        $region43: #{tpu_custom_call.1} parent=35 // pred_region
          %243 = dma.done %s236, 8192
        $region44: #{tpu_custom_call.1} parent=35 // pred_fallthru
          _
        // Predicated region
        $region45: #{tpu_custom_call.1} parent=35 // pred_check
          %p244 = pneg %p91
        $region46: #{tpu_custom_call.1} parent=35 // pred_check_branch
          %246 = sbr.rel (%p244) target = $region48
        $region47: #{tpu_custom_call.1} parent=35 // pred_region
          %247 = dma.done [#allocation7], 128
        $region48: #{tpu_custom_call.1} parent=35 // pred_fallthru
          _
        // Predicated region
        $region49: #{tpu_custom_call.1} parent=35 // pred_check
          %p248 = pneg %p112
        $region50: #{tpu_custom_call.1} parent=35 // pred_check_branch
          %250 = sbr.rel (%p248) target = $region52
        $region51: #{tpu_custom_call.1} parent=35 // pred_region
          %251 = dma.done [#allocation10], 6144
        $region52: #{tpu_custom_call.1} parent=35 // pred_fallthru
          _
        %s252 = sand.u32 %s31, 1
        %s253 = scalar_lea.sflag [#allocation4], %s252
        %s254 = sand.u32 %s31, 1
        %s255 = smul.addr %s254, 64
        %s256 = scalar_lea.vmem [#allocation3], %s255
        %p257 = pneg %p44
        %p258 = pneg %p41
        %s259 = sand.u32 %s23, 1
        %s260 = scalar_lea.sflag [#allocation7], %s259
        %s261 = sand.u32 %s57, 1
        %s262 = smul.addr %s261, 512
        %s263 = scalar_lea.vmem [#allocation6], %s262
        %p264 = pneg %p70
        %p265 = pneg %p67
        %p266 = pneg %p91
        %p267 = pneg %p88
        %p268 = pneg %p112
        %p269 = pneg %p109
        %p270 = pneg %p133
        %p271 = pneg %p130
        %s272 = smul.u32 4, %s23
        %s273 = smul.u32 64, %s23
        %p275 = scmp.eq.s32.totalorder %s23, 0
        // Predicated region
        $region53: #{tpu_custom_call.1} parent=35 // pred_check
          %p276 = pneg %p275
        $region54: #{tpu_custom_call.1} parent=35 // pred_check_branch
          %278 = sbr.rel (%p276) target = $region56
        $region55: #{tpu_custom_call.1} parent=35 // pred_region
          %279 = vst [vmem:[#allocation2] sm:$0xff] 0.0
          %280 = vst [vmem:[#allocation2 + $0x8] sm:$0xff] 0.0
          %281 = vst [vmem:[#allocation2 + $0x10] sm:$0xff] 0.0
          %282 = vst [vmem:[#allocation2 + $0x18] sm:$0xff] 0.0
        $region56: #{tpu_custom_call.1} parent=35 // pred_fallthru
          _
        %v283 = vld [vmem:[#allocation2] sm:$0xff]
        %v284 = vld [vmem:[#allocation2 + $0x8] sm:$0xff]
        %v285 = vld [vmem:[#allocation2 + $0x10] sm:$0xff]
        %v286 = vld [vmem:[#allocation2 + $0x18] sm:$0xff]
        %v287 = vld [vmem:[%s230] sm:$0xff]
        %v288 = vld [vmem:[%s230 + $0x8] sm:$0xff]
        %v289 = vld [vmem:[%s230 + $0x10] sm:$0xff]
        %v290 = vld [vmem:[%s230 + $0x18] sm:$0xff]
        %v291 = vld [vmem:[%s230 + $0x20] sm:$0xff]
        %v292 = vld [vmem:[%s230 + $0x28] sm:$0xff]
        %v293 = vld [vmem:[%s230 + $0x30] sm:$0xff]
        %v294 = vld [vmem:[%s230 + $0x38] sm:$0xff]
        %v295 = vpack.c.bf16 %v291, %v287
        %v296 = vpack.c.bf16 %v292, %v288
        %v297 = vpack.c.bf16 %v293, %v289
        %v298 = vpack.c.bf16 %v294, %v290
        %v299 = vld [vmem:[%s239] sm:$0xff]
        %v300 = vld [vmem:[%s239 + $0x8] sm:$0xff]
        %v301 = vld [vmem:[%s239 + $0x10] sm:$0xff]
        %v302 = vld [vmem:[%s239 + $0x18] sm:$0xff]
        %v303 = vld [vmem:[%s239 + $0x20] sm:$0xff]
        %v304 = vld [vmem:[%s239 + $0x28] sm:$0xff]
        %v305 = vld [vmem:[%s239 + $0x30] sm:$0xff]
        %v306 = vld [vmem:[%s239 + $0x38] sm:$0xff]
        %v307 = vld [vmem:[%s239 + $0x40] sm:$0xff]
        %v308 = vld [vmem:[%s239 + $0x48] sm:$0xff]
        %v309 = vld [vmem:[%s239 + $0x50] sm:$0xff]
        %v310 = vld [vmem:[%s239 + $0x58] sm:$0xff]
        %v311 = vld [vmem:[%s239 + $0x60] sm:$0xff]
        %v312 = vld [vmem:[%s239 + $0x68] sm:$0xff]
        %v313 = vld [vmem:[%s239 + $0x70] sm:$0xff]
        %v314 = vld [vmem:[%s239 + $0x78] sm:$0xff]
        %v315 = vld [vmem:[%s239 + $0x80] sm:$0xff]
        %v316 = vld [vmem:[%s239 + $0x88] sm:$0xff]
        %v317 = vld [vmem:[%s239 + $0x90] sm:$0xff]
        %v318 = vld [vmem:[%s239 + $0x98] sm:$0xff]
        %v319 = vld [vmem:[%s239 + $0xa0] sm:$0xff]
        %v320 = vld [vmem:[%s239 + $0xa8] sm:$0xff]
        %v321 = vld [vmem:[%s239 + $0xb0] sm:$0xff]
        %v322 = vld [vmem:[%s239 + $0xb8] sm:$0xff]
        %v323 = vld [vmem:[%s239 + $0xc0] sm:$0xff]
        %v324 = vld [vmem:[%s239 + $0xc8] sm:$0xff]
        %v325 = vld [vmem:[%s239 + $0xd0] sm:$0xff]
        %v326 = vld [vmem:[%s239 + $0xd8] sm:$0xff]
        %v327 = vld [vmem:[%s239 + $0xe0] sm:$0xff]
        %v328 = vld [vmem:[%s239 + $0xe8] sm:$0xff]
        %v329 = vld [vmem:[%s239 + $0xf0] sm:$0xff]
        %v330 = vld [vmem:[%s239 + $0xf8] sm:$0xff]
        %v331 = vld [vmem:[%s239 + $0x100] sm:$0xff]
        %v332 = vld [vmem:[%s239 + $0x108] sm:$0xff]
        %v333 = vld [vmem:[%s239 + $0x110] sm:$0xff]
        %v334 = vld [vmem:[%s239 + $0x118] sm:$0xff]
        %v335 = vld [vmem:[%s239 + $0x120] sm:$0xff]
        %v336 = vld [vmem:[%s239 + $0x128] sm:$0xff]
        %v337 = vld [vmem:[%s239 + $0x130] sm:$0xff]
        %v338 = vld [vmem:[%s239 + $0x138] sm:$0xff]
        %v339 = vld [vmem:[%s239 + $0x140] sm:$0xff]
        %v340 = vld [vmem:[%s239 + $0x148] sm:$0xff]
        %v341 = vld [vmem:[%s239 + $0x150] sm:$0xff]
        %v342 = vld [vmem:[%s239 + $0x158] sm:$0xff]
        %v343 = vld [vmem:[%s239 + $0x160] sm:$0xff]
        %v344 = vld [vmem:[%s239 + $0x168] sm:$0xff]
        %v345 = vld [vmem:[%s239 + $0x170] sm:$0xff]
        %v346 = vld [vmem:[%s239 + $0x178] sm:$0xff]
        %v347 = vld [vmem:[%s239 + $0x180] sm:$0xff]
        %v348 = vld [vmem:[%s239 + $0x188] sm:$0xff]
        %v349 = vld [vmem:[%s239 + $0x190] sm:$0xff]
        %v350 = vld [vmem:[%s239 + $0x198] sm:$0xff]
        %v351 = vld [vmem:[%s239 + $0x1a0] sm:$0xff]
        %v352 = vld [vmem:[%s239 + $0x1a8] sm:$0xff]
        %v353 = vld [vmem:[%s239 + $0x1b0] sm:$0xff]
        %v354 = vld [vmem:[%s239 + $0x1b8] sm:$0xff]
        %v355 = vld [vmem:[%s239 + $0x1c0] sm:$0xff]
        %v356 = vld [vmem:[%s239 + $0x1c8] sm:$0xff]
        %v357 = vld [vmem:[%s239 + $0x1d0] sm:$0xff]
        %v358 = vld [vmem:[%s239 + $0x1d8] sm:$0xff]
        %v359 = vld [vmem:[%s239 + $0x1e0] sm:$0xff]
        %v360 = vld [vmem:[%s239 + $0x1e8] sm:$0xff]
        %v361 = vld [vmem:[%s239 + $0x1f0] sm:$0xff]
        %v362 = vld [vmem:[%s239 + $0x1f8] sm:$0xff]
        %v427 = vunpack.c.l.b16 %v299
        %v428 = vunpack.c.h.b16 %v299
        %v429 = vunpack.c.l.b16 %v300
        %v430 = vunpack.c.h.b16 %v300
        %v431 = vunpack.c.l.b16 %v301
        %v432 = vunpack.c.h.b16 %v301
        %v433 = vunpack.c.l.b16 %v302
        %v434 = vunpack.c.h.b16 %v302
        %v435 = vunpack.c.l.b16 %v303
        %v436 = vunpack.c.h.b16 %v303
        %v437 = vunpack.c.l.b16 %v304
        %v438 = vunpack.c.h.b16 %v304
        %v439 = vunpack.c.l.b16 %v305
        %v440 = vunpack.c.h.b16 %v305
        %v441 = vunpack.c.l.b16 %v306
        %v442 = vunpack.c.h.b16 %v306
        %v443 = vunpack.c.l.b16 %v307
        %v444 = vunpack.c.h.b16 %v307
        %v445 = vunpack.c.l.b16 %v308
        %v446 = vunpack.c.h.b16 %v308
        %v447 = vunpack.c.l.b16 %v309
        %v448 = vunpack.c.h.b16 %v309
        %v449 = vunpack.c.l.b16 %v310
        %v450 = vunpack.c.h.b16 %v310
        %v451 = vunpack.c.l.b16 %v311
        %v452 = vunpack.c.h.b16 %v311
        %v453 = vunpack.c.l.b16 %v312
        %v454 = vunpack.c.h.b16 %v312
        %v455 = vunpack.c.l.b16 %v313
        %v456 = vunpack.c.h.b16 %v313
        %v457 = vunpack.c.l.b16 %v314
        %v458 = vunpack.c.h.b16 %v314
        %v459 = vunpack.c.l.b16 %v315
        %v460 = vunpack.c.h.b16 %v315
        %v461 = vunpack.c.l.b16 %v316
        %v462 = vunpack.c.h.b16 %v316
        %v463 = vunpack.c.l.b16 %v317
        %v464 = vunpack.c.h.b16 %v317
        %v465 = vunpack.c.l.b16 %v318
        %v466 = vunpack.c.h.b16 %v318
        %v467 = vunpack.c.l.b16 %v319
        %v468 = vunpack.c.h.b16 %v319
        %v469 = vunpack.c.l.b16 %v320
        %v470 = vunpack.c.h.b16 %v320
        %v471 = vunpack.c.l.b16 %v321
        %v472 = vunpack.c.h.b16 %v321
        %v473 = vunpack.c.l.b16 %v322
        %v474 = vunpack.c.h.b16 %v322
        %v475 = vunpack.c.l.b16 %v323
        %v476 = vunpack.c.h.b16 %v323
        %v477 = vunpack.c.l.b16 %v324
        %v478 = vunpack.c.h.b16 %v324
        %v479 = vunpack.c.l.b16 %v325
        %v480 = vunpack.c.h.b16 %v325
        %v481 = vunpack.c.l.b16 %v326
        %v482 = vunpack.c.h.b16 %v326
        %v483 = vunpack.c.l.b16 %v327
        %v484 = vunpack.c.h.b16 %v327
        %v485 = vunpack.c.l.b16 %v328
        %v486 = vunpack.c.h.b16 %v328
        %v487 = vunpack.c.l.b16 %v329
        %v488 = vunpack.c.h.b16 %v329
        %v489 = vunpack.c.l.b16 %v330
        %v490 = vunpack.c.h.b16 %v330
        %v491 = vunpack.c.l.b16 %v331
        %v492 = vunpack.c.h.b16 %v331
        %v493 = vunpack.c.l.b16 %v332
        %v494 = vunpack.c.h.b16 %v332
        %v495 = vunpack.c.l.b16 %v333
        %v496 = vunpack.c.h.b16 %v333
        %v497 = vunpack.c.l.b16 %v334
        %v498 = vunpack.c.h.b16 %v334
        %v499 = vunpack.c.l.b16 %v335
        %v500 = vunpack.c.h.b16 %v335
        %v501 = vunpack.c.l.b16 %v336
        %v502 = vunpack.c.h.b16 %v336
        %v503 = vunpack.c.l.b16 %v337
        %v504 = vunpack.c.h.b16 %v337
        %v505 = vunpack.c.l.b16 %v338
        %v506 = vunpack.c.h.b16 %v338
        %v507 = vunpack.c.l.b16 %v339
        %v508 = vunpack.c.h.b16 %v339
        %v509 = vunpack.c.l.b16 %v340
        %v510 = vunpack.c.h.b16 %v340
        %v511 = vunpack.c.l.b16 %v341
        %v512 = vunpack.c.h.b16 %v341
        %v513 = vunpack.c.l.b16 %v342
        %v514 = vunpack.c.h.b16 %v342
        %v515 = vunpack.c.l.b16 %v343
        %v516 = vunpack.c.h.b16 %v343
        %v517 = vunpack.c.l.b16 %v344
        %v518 = vunpack.c.h.b16 %v344
        %v519 = vunpack.c.l.b16 %v345
        %v520 = vunpack.c.h.b16 %v345
        %v521 = vunpack.c.l.b16 %v346
        %v522 = vunpack.c.h.b16 %v346
        %v523 = vunpack.c.l.b16 %v347
        %v524 = vunpack.c.h.b16 %v347
        %v525 = vunpack.c.l.b16 %v348
        %v526 = vunpack.c.h.b16 %v348
        %v527 = vunpack.c.l.b16 %v349
        %v528 = vunpack.c.h.b16 %v349
        %v529 = vunpack.c.l.b16 %v350
        %v530 = vunpack.c.h.b16 %v350
        %v531 = vunpack.c.l.b16 %v351
        %v532 = vunpack.c.h.b16 %v351
        %v533 = vunpack.c.l.b16 %v352
        %v534 = vunpack.c.h.b16 %v352
        %v535 = vunpack.c.l.b16 %v353
        %v536 = vunpack.c.h.b16 %v353
        %v537 = vunpack.c.l.b16 %v354
        %v538 = vunpack.c.h.b16 %v354
        %v539 = vunpack.c.l.b16 %v355
        %v540 = vunpack.c.h.b16 %v355
        %v541 = vunpack.c.l.b16 %v356
        %v542 = vunpack.c.h.b16 %v356
        %v543 = vunpack.c.l.b16 %v357
        %v544 = vunpack.c.h.b16 %v357
        %v545 = vunpack.c.l.b16 %v358
        %v546 = vunpack.c.h.b16 %v358
        %v547 = vunpack.c.l.b16 %v359
        %v548 = vunpack.c.h.b16 %v359
        %v549 = vunpack.c.l.b16 %v360
        %v550 = vunpack.c.h.b16 %v360
        %v551 = vunpack.c.l.b16 %v361
        %v552 = vunpack.c.h.b16 %v361
        %v553 = vunpack.c.l.b16 %v362
        %v554 = vunpack.c.h.b16 %v362
        %v555 = vpack.c.b16 %v429, %v427
        %v556 = vpack.c.b16 %v430, %v428
        %v557 = vpack.c.b16 %v433, %v431
        %v558 = vpack.c.b16 %v434, %v432
        %v559 = vpack.c.b16 %v437, %v435
        %v560 = vpack.c.b16 %v438, %v436
        %v561 = vpack.c.b16 %v441, %v439
        %v562 = vpack.c.b16 %v442, %v440
        %v563 = vpack.c.b16 %v445, %v443
        %v564 = vpack.c.b16 %v446, %v444
        %v565 = vpack.c.b16 %v449, %v447
        %v566 = vpack.c.b16 %v450, %v448
        %v567 = vpack.c.b16 %v453, %v451
        %v568 = vpack.c.b16 %v454, %v452
        %v569 = vpack.c.b16 %v457, %v455
        %v570 = vpack.c.b16 %v458, %v456
        %v571 = vpack.c.b16 %v461, %v459
        %v572 = vpack.c.b16 %v462, %v460
        %v573 = vpack.c.b16 %v465, %v463
        %v574 = vpack.c.b16 %v466, %v464
        %v575 = vpack.c.b16 %v469, %v467
        %v576 = vpack.c.b16 %v470, %v468
        %v577 = vpack.c.b16 %v473, %v471
        %v578 = vpack.c.b16 %v474, %v472
        %v579 = vpack.c.b16 %v477, %v475
        %v580 = vpack.c.b16 %v478, %v476
        %v581 = vpack.c.b16 %v481, %v479
        %v582 = vpack.c.b16 %v482, %v480
        %v583 = vpack.c.b16 %v485, %v483
        %v584 = vpack.c.b16 %v486, %v484
        %v585 = vpack.c.b16 %v489, %v487
        %v586 = vpack.c.b16 %v490, %v488
        %v587 = vpack.c.b16 %v493, %v491
        %v588 = vpack.c.b16 %v494, %v492
        %v589 = vpack.c.b16 %v497, %v495
        %v590 = vpack.c.b16 %v498, %v496
        %v591 = vpack.c.b16 %v501, %v499
        %v592 = vpack.c.b16 %v502, %v500
        %v593 = vpack.c.b16 %v505, %v503
        %v594 = vpack.c.b16 %v506, %v504
        %v595 = vpack.c.b16 %v509, %v507
        %v596 = vpack.c.b16 %v510, %v508
        %v597 = vpack.c.b16 %v513, %v511
        %v598 = vpack.c.b16 %v514, %v512
        %v599 = vpack.c.b16 %v517, %v515
        %v600 = vpack.c.b16 %v518, %v516
        %v601 = vpack.c.b16 %v521, %v519
        %v602 = vpack.c.b16 %v522, %v520
        %v603 = vpack.c.b16 %v525, %v523
        %v604 = vpack.c.b16 %v526, %v524
        %v605 = vpack.c.b16 %v529, %v527
        %v606 = vpack.c.b16 %v530, %v528
        %v607 = vpack.c.b16 %v533, %v531
        %v608 = vpack.c.b16 %v534, %v532
        %v609 = vpack.c.b16 %v537, %v535
        %v610 = vpack.c.b16 %v538, %v536
        %v611 = vpack.c.b16 %v541, %v539
        %v612 = vpack.c.b16 %v542, %v540
        %v613 = vpack.c.b16 %v545, %v543
        %v614 = vpack.c.b16 %v546, %v544
        %v615 = vpack.c.b16 %v549, %v547
        %v616 = vpack.c.b16 %v550, %v548
        %v617 = vpack.c.b16 %v553, %v551
        %v618 = vpack.c.b16 %v554, %v552
        %683 = vmatprep.subr.bf16.mxu0 %v556
        %684 = vmatpush1.bf16.msra.mxu0 %v555
        %685 = vmatprep.subr.bf16.mxu0 %v558
        %686 = vmatpush1.bf16.msra.mxu0 %v557
        %687 = vmatprep.subr.bf16.mxu0 %v560
        %688 = vmatpush1.bf16.msra.mxu0 %v559
        %689 = vmatprep.subr.bf16.mxu0 %v562
        %690 = vmatpush1.bf16.msra.mxu0 %v561
        %691 = vmatprep.subr.bf16.mxu0 %v564
        %692 = vmatpush1.bf16.msra.mxu0 %v563
        %693 = vmatprep.subr.bf16.mxu0 %v566
        %694 = vmatpush1.bf16.msra.mxu0 %v565
        %695 = vmatprep.subr.bf16.mxu0 %v568
        %696 = vmatpush1.bf16.msra.mxu0 %v567
        %697 = vmatprep.subr.bf16.mxu0 %v570
        %698 = vmatpush1.bf16.msra.mxu0 %v569
        %699 = vmatprep.subr.bf16.mxu0 %v572
        %700 = vmatpush1.bf16.msra.mxu0 %v571
        %701 = vmatprep.subr.bf16.mxu0 %v574
        %702 = vmatpush1.bf16.msra.mxu0 %v573
        %703 = vmatprep.subr.bf16.mxu0 %v576
        %704 = vmatpush1.bf16.msra.mxu0 %v575
        %705 = vmatprep.subr.bf16.mxu0 %v578
        %706 = vmatpush1.bf16.msra.mxu0 %v577
        %707 = vmatprep.subr.bf16.mxu0 %v580
        %708 = vmatpush1.bf16.msra.mxu0 %v579
        %709 = vmatprep.subr.bf16.mxu0 %v582
        %710 = vmatpush1.bf16.msra.mxu0 %v581
        %711 = vmatprep.subr.bf16.mxu0 %v584
        %712 = vmatpush1.bf16.msra.mxu0 %v583
        %713 = vmatprep.subr.bf16.mxu0 %v586
        %714 = vmatpush1.bf16.msra.mxu0 %v585
        %715 = vmatprep.mubr.bf16.mxu0 %v296
        %716 = vmatmul.mubr.bf16.gmra.mrb[0].mxu0 %v295
        %v717 = vpop.f32.mrb[0].mxu0
        %v718 = vadd.f32 0.0, %v717
        %v719 = vpop.f32.mrb[0].mxu0
        %v720 = vadd.f32 0.0, %v719
        %v721 = vpop.f32.mrb[0].mxu0
        %v722 = vadd.f32 0.0, %v721
        %v723 = vpop.f32.mrb[0].mxu0
        %v724 = vadd.f32 0.0, %v723
        %725 = vdwg.mxu0
        %726 = vmatprep.subr.bf16.mxu0 %v588
        %727 = vmatpush1.bf16.msra.mxu0 %v587
        %728 = vmatprep.subr.bf16.mxu0 %v590
        %729 = vmatpush1.bf16.msra.mxu0 %v589
        %730 = vmatprep.subr.bf16.mxu0 %v592
        %731 = vmatpush1.bf16.msra.mxu0 %v591
        %732 = vmatprep.subr.bf16.mxu0 %v594
        %733 = vmatpush1.bf16.msra.mxu0 %v593
        %734 = vmatprep.subr.bf16.mxu0 %v596
        %735 = vmatpush1.bf16.msra.mxu0 %v595
        %736 = vmatprep.subr.bf16.mxu0 %v598
        %737 = vmatpush1.bf16.msra.mxu0 %v597
        %738 = vmatprep.subr.bf16.mxu0 %v600
        %739 = vmatpush1.bf16.msra.mxu0 %v599
        %740 = vmatprep.subr.bf16.mxu0 %v602
        %741 = vmatpush1.bf16.msra.mxu0 %v601
        %742 = vmatprep.subr.bf16.mxu0 %v604
        %743 = vmatpush1.bf16.msra.mxu0 %v603
        %744 = vmatprep.subr.bf16.mxu0 %v606
        %745 = vmatpush1.bf16.msra.mxu0 %v605
        %746 = vmatprep.subr.bf16.mxu0 %v608
        %747 = vmatpush1.bf16.msra.mxu0 %v607
        %748 = vmatprep.subr.bf16.mxu0 %v610
        %749 = vmatpush1.bf16.msra.mxu0 %v609
        %750 = vmatprep.subr.bf16.mxu0 %v612
        %751 = vmatpush1.bf16.msra.mxu0 %v611
        %752 = vmatprep.subr.bf16.mxu0 %v614
        %753 = vmatpush1.bf16.msra.mxu0 %v613
        %754 = vmatprep.subr.bf16.mxu0 %v616
        %755 = vmatpush1.bf16.msra.mxu0 %v615
        %756 = vmatprep.subr.bf16.mxu0 %v618
        %757 = vmatpush1.bf16.msra.mxu0 %v617
        %758 = vmatprep.mubr.bf16.mxu0 %v298
        %759 = vmatmul.mubr.bf16.gmra.mrb[0].mxu0 %v297
        %v760 = vpop.f32.mrb[0].mxu0
        %v761 = vadd.f32 %v718, %v760
        %v762 = vpop.f32.mrb[0].mxu0
        %v763 = vadd.f32 %v720, %v762
        %v764 = vpop.f32.mrb[0].mxu0
        %v765 = vadd.f32 %v722, %v764
        %v766 = vpop.f32.mrb[0].mxu0
        %v767 = vadd.f32 %v724, %v766
        %768 = vdwg.mxu0
        %v769 = vadd.f32 %v283, %v761
        %v770 = vadd.f32 %v284, %v763
        %v771 = vadd.f32 %v285, %v765
        %v772 = vadd.f32 %v286, %v767
        %773 = vst [vmem:[#allocation2] sm:$0xff] %v769
        %774 = vst [vmem:[#allocation2 + $0x8] sm:$0xff] %v770
        %775 = vst [vmem:[#allocation2 + $0x10] sm:$0xff] %v771
        %776 = vst [vmem:[#allocation2 + $0x18] sm:$0xff] %v772
        %p777 = scmp.eq.s32.totalorder %s23, 7
        // Predicated region
        $region57: #{tpu_custom_call.1} parent=35 // pred_check
          %p778 = pneg %p777
        $region58: #{tpu_custom_call.1} parent=35 // pred_check_branch
          %780 = sbr.rel (%p778) target = $region60
        $region59: #{tpu_custom_call.1} parent=35 // pred_region
          %v781 = vld [vmem:[#allocation2] sm:$0xff]
          %v782 = vld [vmem:[#allocation2 + $0x8] sm:$0xff]
          %v783 = vld [vmem:[#allocation2 + $0x10] sm:$0xff]
          %v784 = vld [vmem:[#allocation2 + $0x18] sm:$0xff]
          %v785 = vld [vmem:[#allocation8] ss:$4 sm:$0x3]
          %v787 = vlaneseq
          %v788 = vshrl.u32 %v787, 7
          %v789 = vsub.s32 0, %v788
          %v790 = vrot.slane %v785, %v789
          %v791 = vlaneseq
          %v792 = vshrl.u32 %v791, 7
          %v793 = vsub.s32 1, %v792
          %v794 = vrot.slane %v785, %v793
          %v797 = vadd.f32 %v781, %v790
          %v798 = vadd.f32 %v782, %v794
          %v799 = vadd.f32 %v783, %v790
          %v800 = vadd.f32 %v784, %v794
          %v801 = vtanh.pop %v797
          %v802 = vtanh.pop %v798
          %v803 = vtanh.pop %v799
          %v804 = vtanh.pop %v800
          %v805 = vld [vmem:[#allocation9] sm:$0xff]
          %v806 = vld [vmem:[#allocation9 + $0xc] sm:$0xff]
          %v807 = vld [vmem:[#allocation9 + $0x18] sm:$0xff]
          %v808 = vld [vmem:[#allocation9 + $0x24] sm:$0xff]
          %v809 = vld [vmem:[#allocation9 + $0x30] sm:$0xff]
          %v810 = vld [vmem:[#allocation9 + $0x3c] sm:$0xff]
          %v811 = vld [vmem:[#allocation9 + $0x48] sm:$0xff]
          %v812 = vld [vmem:[#allocation9 + $0x54] sm:$0xff]
          %v813 = vld [vmem:[#allocation9 + $0x60] sm:$0xff]
          %v814 = vld [vmem:[#allocation9 + $0x6c] sm:$0xff]
          %v815 = vld [vmem:[#allocation9 + $0x78] sm:$0xff]
          %v816 = vld [vmem:[#allocation9 + $0x84] sm:$0xff]
          %v817 = vld [vmem:[#allocation9 + $0x90] sm:$0xff]
          %v818 = vld [vmem:[#allocation9 + $0x9c] sm:$0xff]
          %v819 = vld [vmem:[#allocation9 + $0xa8] sm:$0xff]
          %v820 = vld [vmem:[#allocation9 + $0xb4] sm:$0xff]
          %v821 = vld [vmem:[#allocation9 + $0xc0] sm:$0xff]
          %v822 = vld [vmem:[#allocation9 + $0xcc] sm:$0xff]
          %v823 = vld [vmem:[#allocation9 + $0xd8] sm:$0xff]
          %v824 = vld [vmem:[#allocation9 + $0xe4] sm:$0xff]
          %v825 = vld [vmem:[#allocation9 + $0xf0] sm:$0xff]
          %v826 = vld [vmem:[#allocation9 + $0xfc] sm:$0xff]
          %v827 = vld [vmem:[#allocation9 + $0x108] sm:$0xff]
          %v828 = vld [vmem:[#allocation9 + $0x114] sm:$0xff]
          %v829 = vld [vmem:[#allocation9 + $0x120] sm:$0xff]
          %v830 = vld [vmem:[#allocation9 + $0x12c] sm:$0xff]
          %v831 = vld [vmem:[#allocation9 + $0x138] sm:$0xff]
          %v832 = vld [vmem:[#allocation9 + $0x144] sm:$0xff]
          %v833 = vld [vmem:[#allocation9 + $0x150] sm:$0xff]
          %v834 = vld [vmem:[#allocation9 + $0x15c] sm:$0xff]
          %v835 = vld [vmem:[#allocation9 + $0x168] sm:$0xff]
          %v836 = vld [vmem:[#allocation9 + $0x174] sm:$0xff]
          %v837 = vpack.c.bf16 %v803, %v801
          %v838 = vpack.c.bf16 %v804, %v802
          %s839 = scalar_lea.vmem [#allocation8], 1
          %v840 = vld [vmem:[%s839] ss:$4 sm:$0x3]
          %v842 = vlaneseq
          %v843 = vshrl.u32 %v842, 7
          %v844 = vsub.s32 0, %v843
          %v845 = vrot.slane %v840, %v844
          %v846 = vlaneseq
          %v847 = vshrl.u32 %v846, 7
          %v848 = vsub.s32 1, %v847
          %v849 = vrot.slane %v840, %v848
          %v884 = vunpack.c.l.b16 %v805
          %v885 = vunpack.c.h.b16 %v805
          %v886 = vunpack.c.l.b16 %v806
          %v887 = vunpack.c.h.b16 %v806
          %v888 = vunpack.c.l.b16 %v807
          %v889 = vunpack.c.h.b16 %v807
          %v890 = vunpack.c.l.b16 %v808
          %v891 = vunpack.c.h.b16 %v808
          %v892 = vunpack.c.l.b16 %v809
          %v893 = vunpack.c.h.b16 %v809
          %v894 = vunpack.c.l.b16 %v810
          %v895 = vunpack.c.h.b16 %v810
          %v896 = vunpack.c.l.b16 %v811
          %v897 = vunpack.c.h.b16 %v811
          %v898 = vunpack.c.l.b16 %v812
          %v899 = vunpack.c.h.b16 %v812
          %v900 = vunpack.c.l.b16 %v813
          %v901 = vunpack.c.h.b16 %v813
          %v902 = vunpack.c.l.b16 %v814
          %v903 = vunpack.c.h.b16 %v814
          %v904 = vunpack.c.l.b16 %v815
          %v905 = vunpack.c.h.b16 %v815
          %v906 = vunpack.c.l.b16 %v816
          %v907 = vunpack.c.h.b16 %v816
          %v908 = vunpack.c.l.b16 %v817
          %v909 = vunpack.c.h.b16 %v817
          %v910 = vunpack.c.l.b16 %v818
          %v911 = vunpack.c.h.b16 %v818
          %v912 = vunpack.c.l.b16 %v819
          %v913 = vunpack.c.h.b16 %v819
          %v914 = vunpack.c.l.b16 %v820
          %v915 = vunpack.c.h.b16 %v820
          %v916 = vunpack.c.l.b16 %v821
          %v917 = vunpack.c.h.b16 %v821
          %v918 = vunpack.c.l.b16 %v822
          %v919 = vunpack.c.h.b16 %v822
          %v920 = vunpack.c.l.b16 %v823
          %v921 = vunpack.c.h.b16 %v823
          %v922 = vunpack.c.l.b16 %v824
          %v923 = vunpack.c.h.b16 %v824
          %v924 = vunpack.c.l.b16 %v825
          %v925 = vunpack.c.h.b16 %v825
          %v926 = vunpack.c.l.b16 %v826
          %v927 = vunpack.c.h.b16 %v826
          %v928 = vunpack.c.l.b16 %v827
          %v929 = vunpack.c.h.b16 %v827
          %v930 = vunpack.c.l.b16 %v828
          %v931 = vunpack.c.h.b16 %v828
          %v932 = vunpack.c.l.b16 %v829
          %v933 = vunpack.c.h.b16 %v829
          %v934 = vunpack.c.l.b16 %v830
          %v935 = vunpack.c.h.b16 %v830
          %v936 = vunpack.c.l.b16 %v831
          %v937 = vunpack.c.h.b16 %v831
          %v938 = vunpack.c.l.b16 %v832
          %v939 = vunpack.c.h.b16 %v832
          %v940 = vunpack.c.l.b16 %v833
          %v941 = vunpack.c.h.b16 %v833
          %v942 = vunpack.c.l.b16 %v834
          %v943 = vunpack.c.h.b16 %v834
          %v944 = vunpack.c.l.b16 %v835
          %v945 = vunpack.c.h.b16 %v835
          %v946 = vunpack.c.l.b16 %v836
          %v947 = vunpack.c.h.b16 %v836
          %v948 = vpack.c.b16 %v886, %v884
          %v949 = vpack.c.b16 %v887, %v885
          %v950 = vpack.c.b16 %v890, %v888
          %v951 = vpack.c.b16 %v891, %v889
          %v952 = vpack.c.b16 %v894, %v892
          %v953 = vpack.c.b16 %v895, %v893
          %v954 = vpack.c.b16 %v898, %v896
          %v955 = vpack.c.b16 %v899, %v897
          %v956 = vpack.c.b16 %v902, %v900
          %v957 = vpack.c.b16 %v903, %v901
          %v958 = vpack.c.b16 %v906, %v904
          %v959 = vpack.c.b16 %v907, %v905
          %v960 = vpack.c.b16 %v910, %v908
          %v961 = vpack.c.b16 %v911, %v909
          %v962 = vpack.c.b16 %v914, %v912
          %v963 = vpack.c.b16 %v915, %v913
          %v964 = vpack.c.b16 %v918, %v916
          %v965 = vpack.c.b16 %v919, %v917
          %v966 = vpack.c.b16 %v922, %v920
          %v967 = vpack.c.b16 %v923, %v921
          %v968 = vpack.c.b16 %v926, %v924
          %v969 = vpack.c.b16 %v927, %v925
          %v970 = vpack.c.b16 %v930, %v928
          %v971 = vpack.c.b16 %v931, %v929
          %v972 = vpack.c.b16 %v934, %v932
          %v973 = vpack.c.b16 %v935, %v933
          %v974 = vpack.c.b16 %v938, %v936
          %v975 = vpack.c.b16 %v939, %v937
          %v976 = vpack.c.b16 %v942, %v940
          %v977 = vpack.c.b16 %v943, %v941
          %v978 = vpack.c.b16 %v946, %v944
          %v979 = vpack.c.b16 %v947, %v945
          %1012 = vmatprep.subr.bf16.mxu0 %v949
          %1013 = vmatpush1.bf16.msra.mxu0 %v948
          %1014 = vmatprep.subr.bf16.mxu0 %v951
          %1015 = vmatpush1.bf16.msra.mxu0 %v950
          %1016 = vmatprep.subr.bf16.mxu0 %v953
          %1017 = vmatpush1.bf16.msra.mxu0 %v952
          %1018 = vmatprep.subr.bf16.mxu0 %v955
          %1019 = vmatpush1.bf16.msra.mxu0 %v954
          %1020 = vmatprep.subr.bf16.mxu0 %v957
          %1021 = vmatpush1.bf16.msra.mxu0 %v956
          %1022 = vmatprep.subr.bf16.mxu0 %v959
          %1023 = vmatpush1.bf16.msra.mxu0 %v958
          %1024 = vmatprep.subr.bf16.mxu0 %v961
          %1025 = vmatpush1.bf16.msra.mxu0 %v960
          %1026 = vmatprep.subr.bf16.mxu0 %v963
          %1027 = vmatpush1.bf16.msra.mxu0 %v962
          %1028 = vmatprep.subr.bf16.mxu0 %v965
          %1029 = vmatpush1.bf16.msra.mxu0 %v964
          %1030 = vmatprep.subr.bf16.mxu0 %v967
          %1031 = vmatpush1.bf16.msra.mxu0 %v966
          %1032 = vmatprep.subr.bf16.mxu0 %v969
          %1033 = vmatpush1.bf16.msra.mxu0 %v968
          %1034 = vmatprep.subr.bf16.mxu0 %v971
          %1035 = vmatpush1.bf16.msra.mxu0 %v970
          %1036 = vmatprep.subr.bf16.mxu0 %v973
          %1037 = vmatpush1.bf16.msra.mxu0 %v972
          %1038 = vmatprep.subr.bf16.mxu0 %v975
          %1039 = vmatpush1.bf16.msra.mxu0 %v974
          %1040 = vmatprep.subr.bf16.mxu0 %v977
          %1041 = vmatpush1.bf16.msra.mxu0 %v976
          %1042 = vmatprep.subr.bf16.mxu0 %v979
          %1043 = vmatpush1.bf16.msra.mxu0 %v978
          %1044 = vmatprep.mubr.bf16.mxu0 %v838
          %1045 = vmatmul.mubr.bf16.gmra.mrb[0].mxu0 %v837
          %v1046 = vpop.f32.mrb[0].mxu0
          %v1047 = vadd.f32 %v845, %v1046
          %v1048 = vpop.f32.mrb[0].mxu0
          %v1049 = vadd.f32 %v849, %v1048
          %v1050 = vpop.f32.mrb[0].mxu0
          %v1051 = vadd.f32 %v845, %v1050
          %v1052 = vpop.f32.mrb[0].mxu0
          %v1053 = vadd.f32 %v849, %v1052
          %1054 = vdwg.mxu0
          %v1055 = vtanh.pop %v1047
          %v1056 = vtanh.pop %v1049
          %v1057 = vtanh.pop %v1051
          %v1058 = vtanh.pop %v1053
          %v1059 = vld [vmem:[#allocation9 + $0x8] sm:$0xf]
          %v1060 = vld [vmem:[#allocation9 + $0x14] sm:$0xf]
          %v1061 = vld [vmem:[#allocation9 + $0x20] sm:$0xf]
          %v1062 = vld [vmem:[#allocation9 + $0x2c] sm:$0xf]
          %v1063 = vld [vmem:[#allocation9 + $0x38] sm:$0xf]
          %v1064 = vld [vmem:[#allocation9 + $0x44] sm:$0xf]
          %v1065 = vld [vmem:[#allocation9 + $0x50] sm:$0xf]
          %v1066 = vld [vmem:[#allocation9 + $0x5c] sm:$0xf]
          %v1067 = vld [vmem:[#allocation9 + $0x68] sm:$0xf]
          %v1068 = vld [vmem:[#allocation9 + $0x74] sm:$0xf]
          %v1069 = vld [vmem:[#allocation9 + $0x80] sm:$0xf]
          %v1070 = vld [vmem:[#allocation9 + $0x8c] sm:$0xf]
          %v1071 = vld [vmem:[#allocation9 + $0x98] sm:$0xf]
          %v1072 = vld [vmem:[#allocation9 + $0xa4] sm:$0xf]
          %v1073 = vld [vmem:[#allocation9 + $0xb0] sm:$0xf]
          %v1074 = vld [vmem:[#allocation9 + $0xbc] sm:$0xf]
          %v1075 = vld [vmem:[#allocation9 + $0xc8] sm:$0xf]
          %v1076 = vld [vmem:[#allocation9 + $0xd4] sm:$0xf]
          %v1077 = vld [vmem:[#allocation9 + $0xe0] sm:$0xf]
          %v1078 = vld [vmem:[#allocation9 + $0xec] sm:$0xf]
          %v1079 = vld [vmem:[#allocation9 + $0xf8] sm:$0xf]
          %v1080 = vld [vmem:[#allocation9 + $0x104] sm:$0xf]
          %v1081 = vld [vmem:[#allocation9 + $0x110] sm:$0xf]
          %v1082 = vld [vmem:[#allocation9 + $0x11c] sm:$0xf]
          %v1083 = vld [vmem:[#allocation9 + $0x128] sm:$0xf]
          %v1084 = vld [vmem:[#allocation9 + $0x134] sm:$0xf]
          %v1085 = vld [vmem:[#allocation9 + $0x140] sm:$0xf]
          %v1086 = vld [vmem:[#allocation9 + $0x14c] sm:$0xf]
          %v1087 = vld [vmem:[#allocation9 + $0x158] sm:$0xf]
          %v1088 = vld [vmem:[#allocation9 + $0x164] sm:$0xf]
          %v1089 = vld [vmem:[#allocation9 + $0x170] sm:$0xf]
          %v1090 = vld [vmem:[#allocation9 + $0x17c] sm:$0xf]
          %v1091 = vpack.c.bf16 %v1057, %v1055
          %v1092 = vpack.c.bf16 %v1058, %v1056
          %v1093 = vld [vmem:[#allocation8 + $0x2] sm:$0x1]
          %v1094 = vlaneseq
          %v1095 = vshrl.u32 %v1094, 7
          %v1096 = vsub.s32 0, %v1095
          %v1097 = vrot.slane %v1093, %v1096
          %v1130 = vunpack.c.l.b16 %v1059
          %v1131 = vunpack.c.l.b16 %v1060
          %v1132 = vunpack.c.l.b16 %v1061
          %v1133 = vunpack.c.l.b16 %v1062
          %v1134 = vunpack.c.l.b16 %v1063
          %v1135 = vunpack.c.l.b16 %v1064
          %v1136 = vunpack.c.l.b16 %v1065
          %v1137 = vunpack.c.l.b16 %v1066
          %v1138 = vunpack.c.l.b16 %v1067
          %v1139 = vunpack.c.l.b16 %v1068
          %v1140 = vunpack.c.l.b16 %v1069
          %v1141 = vunpack.c.l.b16 %v1070
          %v1142 = vunpack.c.l.b16 %v1071
          %v1143 = vunpack.c.l.b16 %v1072
          %v1144 = vunpack.c.l.b16 %v1073
          %v1145 = vunpack.c.l.b16 %v1074
          %v1146 = vunpack.c.l.b16 %v1075
          %v1147 = vunpack.c.l.b16 %v1076
          %v1148 = vunpack.c.l.b16 %v1077
          %v1149 = vunpack.c.l.b16 %v1078
          %v1150 = vunpack.c.l.b16 %v1079
          %v1151 = vunpack.c.l.b16 %v1080
          %v1152 = vunpack.c.l.b16 %v1081
          %v1153 = vunpack.c.l.b16 %v1082
          %v1154 = vunpack.c.l.b16 %v1083
          %v1155 = vunpack.c.l.b16 %v1084
          %v1156 = vunpack.c.l.b16 %v1085
          %v1157 = vunpack.c.l.b16 %v1086
          %v1158 = vunpack.c.l.b16 %v1087
          %v1159 = vunpack.c.l.b16 %v1088
          %v1160 = vunpack.c.l.b16 %v1089
          %v1161 = vunpack.c.l.b16 %v1090
          %v1162 = vpack.c.b16 %v1131, %v1130
          %v1163 = vpack.c.b16 %v1133, %v1132
          %v1164 = vpack.c.b16 %v1135, %v1134
          %v1165 = vpack.c.b16 %v1137, %v1136
          %v1166 = vpack.c.b16 %v1139, %v1138
          %v1167 = vpack.c.b16 %v1141, %v1140
          %v1168 = vpack.c.b16 %v1143, %v1142
          %v1169 = vpack.c.b16 %v1145, %v1144
          %v1170 = vpack.c.b16 %v1147, %v1146
          %v1171 = vpack.c.b16 %v1149, %v1148
          %v1172 = vpack.c.b16 %v1151, %v1150
          %v1173 = vpack.c.b16 %v1153, %v1152
          %v1174 = vpack.c.b16 %v1155, %v1154
          %v1175 = vpack.c.b16 %v1157, %v1156
          %v1176 = vpack.c.b16 %v1159, %v1158
          %v1177 = vpack.c.b16 %v1161, %v1160
          %1194 = vmatprep.subr.bf16.mxu0 0
          %1195 = vmatpush1.bf16.msra.mxu0 %v1162
          %1196 = vmatprep.subr.bf16.mxu0 0
          %1197 = vmatpush1.bf16.msra.mxu0 %v1163
          %1198 = vmatprep.subr.bf16.mxu0 0
          %1199 = vmatpush1.bf16.msra.mxu0 %v1164
          %1200 = vmatprep.subr.bf16.mxu0 0
          %1201 = vmatpush1.bf16.msra.mxu0 %v1165
          %1202 = vmatprep.subr.bf16.mxu0 0
          %1203 = vmatpush1.bf16.msra.mxu0 %v1166
          %1204 = vmatprep.subr.bf16.mxu0 0
          %1205 = vmatpush1.bf16.msra.mxu0 %v1167
          %1206 = vmatprep.subr.bf16.mxu0 0
          %1207 = vmatpush1.bf16.msra.mxu0 %v1168
          %1208 = vmatprep.subr.bf16.mxu0 0
          %1209 = vmatpush1.bf16.msra.mxu0 %v1169
          %1210 = vmatprep.subr.bf16.mxu0 0
          %1211 = vmatpush1.bf16.msra.mxu0 %v1170
          %1212 = vmatprep.subr.bf16.mxu0 0
          %1213 = vmatpush1.bf16.msra.mxu0 %v1171
          %1214 = vmatprep.subr.bf16.mxu0 0
          %1215 = vmatpush1.bf16.msra.mxu0 %v1172
          %1216 = vmatprep.subr.bf16.mxu0 0
          %1217 = vmatpush1.bf16.msra.mxu0 %v1173
          %1218 = vmatprep.subr.bf16.mxu0 0
          %1219 = vmatpush1.bf16.msra.mxu0 %v1174
          %1220 = vmatprep.subr.bf16.mxu0 0
          %1221 = vmatpush1.bf16.msra.mxu0 %v1175
          %1222 = vmatprep.subr.bf16.mxu0 0
          %1223 = vmatpush1.bf16.msra.mxu0 %v1176
          %1224 = vmatprep.subr.bf16.mxu0 0
          %1225 = vmatpush1.bf16.msra.mxu0 %v1177
          %1226 = vmatprep.mubr.bf16.mxu0 %v1092
          %1227 = vmatmul.mubr.bf16.gmra.mrb[0].mxu0 %v1091
          %v1228 = vpop.f32.mrb[0].mxu0
          %v1229 = vadd.f32 %v1097, %v1228
          %v1230 = vpop.f32.mrb[0].mxu0
          %v1231 = vpop.f32.mrb[0].mxu0
          %v1232 = vadd.f32 %v1097, %v1231
          %v1233 = vpop.f32.mrb[0].mxu0
          %1234 = vdwg.mxu0
          %1235 = vst [vmem:[#allocation11] sm:$0xff] %v1229
          %1236 = vst [vmem:[#allocation11 + $0x8] sm:$0xff] %v1232
        $region60: #{tpu_custom_call.1} parent=35 // pred_fallthru
          _
        // Predicated region
        $region61: #{tpu_custom_call.1} parent=35 // pred_check
          %p1237 = pneg %p130
        $region62: #{tpu_custom_call.1} parent=35 // pred_check_branch
          %1239 = sbr.rel (%p1237) target = $region64
        $region63: #{tpu_custom_call.1} parent=35 // pred_region
          %s1241 = ssub.s32 256, 256
          %1242 = vsyncadd [#allocation5], %s1241
          %s1243 = sshll.u32 [#allocation11], 4
          %s1244 = int_to_ptr.vmem [resolvable:$true] %s1243
          %1249 = dma.vmem_to_hbm [thread:$0]  %s1244, 256, %s4, [#allocation5], 128, 128, 8
        $region64: #{tpu_custom_call.1} parent=35 // pred_fallthru
          _
        // Predicated region
        $region65: #{tpu_custom_call.1} parent=35 // pred_check
          %p1250 = pneg %p130
        $region66: #{tpu_custom_call.1} parent=35 // pred_check_branch
          %1252 = sbr.rel (%p1250) target = $region68
        $region67: #{tpu_custom_call.1} parent=35 // pred_region
          %1253 = dma.done [#allocation5], 256
        $region68: #{tpu_custom_call.1} parent=35 // pred_fallthru
          _
      $region36: #{tpu_custom_call.1} parent=5 // pred_fallthru
        _
      %p1254 = scmp.le.s32.totalorder 2, %s18
      // Predicated region
      $region69: #{tpu_custom_call.1} parent=5 // pred_check
        %p1255 = pneg %p1254
      $region70: #{tpu_custom_call.1} parent=5 // pred_check_branch
        %1257 = sbr.rel (%p1255) target = $region72
      $region71: #{tpu_custom_call.1} parent=5 // pred_region
        %s1258 = ssub.s32 %s18, 2
      $region72: #{tpu_custom_call.1} parent=5 // pred_fallthru
        _
    $region6: #{tpu_custom_call.1} parent=1 // loop_footer
      %s22 = sadd.s32 1, %s18
    $region7: #{tpu_custom_call.1} parent=1 // loop_footer_branch
      %17 = sbr.rel target = $region3
    $region8: #{tpu_custom_call.1} parent=1 // loop_exit
      _
    %1259 = vsyncpa [#allocation4], 1
    %s1260 = scalar_lea.sflag [#allocation4], 1
    %1261 = vsyncpa %s1260, 1
    %1262 = vsyncpa [#allocation7], 1
    %s1263 = scalar_lea.sflag [#allocation7], 1
    %1264 = vsyncpa %s1263, 1
    %1265 = vsyncpa [#allocation10], 1
    %1266 = vsyncpa [#allocation5], 1
    %s1267 = scalar_lea.sflag [#allocation5], 1
    %1268 = vsyncpa %s1267, 1

</llo_original>
